<compile_context>
chip_gen: v5e
topology: v5e:2x2
jax: 0.10.0
libtpu: 0.0.40
codegen_flags: <defaults>
</compile_context>

<pallas_src>
import functools

import jax
import jax.numpy as jnp
from jax.experimental import pallas as pl
from jax.experimental.pallas import tpu as pltpu

EPS = 1e-5
LANE = 128


def _round_up(x, m):
    return (x + m - 1) // m * m


def fused_gnn_kernel(a_ref, x_ref, w_ref, ss_ref, o_ref, *, num_layers, k_pad):
    """All GCN layers for one graph (one grid step) in one kernel body.

    a_ref : [1, Np, Np]   normalized adjacency (zero-padded)
    x_ref : [1, Np, F]    node features, F = 128 lanes (zero-padded)
    w_ref : [L, Kp, F]    zero-padded weights, contraction dim shrunk to Kp
    ss_ref: [2*L, F]      rows (2l, 2l+1) = folded (scale, shift) of layer l
    o_ref : [1, Np, F]    final layer output (padded; valid cols = num_classes)
    """
    h = x_ref[0]                                   # [Np, F]
    for li in range(num_layers):                   # statically unrolled
        # Re-index refs at the call sites (no hoisted A/W live ranges).
        xw = jnp.dot(h[:, :k_pad], w_ref[li],
                     preferred_element_type=jnp.float32)      # MXU: [Np, F]
        m = jnp.dot(a_ref[0], xw,
                    preferred_element_type=jnp.float32)       # MXU: [Np, F]
        scale = ss_ref[2 * li:2 * li + 1, :]                  # [1, F]
        shift = ss_ref[2 * li + 1:2 * li + 2, :]              # [1, F]
        h = m * scale + shift          # conv bias + BatchNorm folded into one f32 FMA
        if li < num_layers - 1:        # last layer has no BN / ReLU
            h = jnp.maximum(h, 0.0)
    o_ref[0] = h


@jax.jit
def trojan_gnn_forward(x, a_hat, params):
    """Fused forward pass.

    Accepts a single graph (x: [N, in_dim], a_hat: [N, N]) or a batch
    (x: [B, N, in_dim], a_hat: [B, N, N]).  Returns [..., N, num_classes].
    """
    single = x.ndim == 2
    if single:
        x = x[None]
        a_hat = a_hat[None]

    bsz, n, in_dim = x.shape
    num_layers = len(params)
    dins = [w.shape[0] for (w, _, _) in params]
    douts = [w.shape[1] for (w, _, _) in params]
    num_classes = douts[-1]

    n_pad = _round_up(n, 8)                          # sublane-aligned rows only
    f_pad = _round_up(max(douts + [in_dim]), LANE)   # lane-dense activations/output
    k_pad = _round_up(max(dins), 8)                  # shrunk contraction dim

    # Zero-pad node-level inputs.
    a_p = jnp.zeros((bsz, n_pad, n_pad), jnp.float32).at[:, :n, :n].set(a_hat)
    x_p = jnp.zeros((bsz, n_pad, f_pad), jnp.float32).at[:, :n, :in_dim].set(x)

    # Stack zero-padded weights and pre-folded (scale, shift) per layer.
    #   h = A_hat @ (X @ W) + b ; BN(h) = (h - mean)*rsqrt(var+eps)*gamma + beta
    #   => scale = gamma * rsqrt(var+eps),  shift = (b - mean) * scale + beta
    w_stack = jnp.zeros((num_layers, k_pad, f_pad), jnp.float32)
    ss_stack = jnp.zeros((2 * num_layers, f_pad), jnp.float32)
    for li, (w, b, bn) in enumerate(params):
        din, dout = w.shape
        w_stack = w_stack.at[li, :din, :dout].set(w)
        if bn is not None:
            gamma, beta, mean, var = bn
            scale = gamma * jax.lax.rsqrt(var + EPS)      # [1, dout]
            shift = (b - mean) * scale + beta             # [1, dout]
        else:
            scale = jnp.ones_like(b)
            shift = b
        ss_stack = ss_stack.at[2 * li, :dout].set(scale[0])
        ss_stack = ss_stack.at[2 * li + 1, :dout].set(shift[0])

    kernel = functools.partial(fused_gnn_kernel, num_layers=num_layers, k_pad=k_pad)
    out_p = pl.pallas_call(
        kernel,
        out_shape=jax.ShapeDtypeStruct((bsz, n_pad, f_pad), jnp.float32),
        grid=(bsz,),
        in_specs=[
            pl.BlockSpec((1, n_pad, n_pad), lambda g: (g, 0, 0)),
            pl.BlockSpec((1, n_pad, f_pad), lambda g: (g, 0, 0)),
            pl.BlockSpec((num_layers, k_pad, f_pad), lambda g: (0, 0, 0)),
            pl.BlockSpec((2 * num_layers, f_pad), lambda g: (0, 0)),
        ],
        out_specs=pl.BlockSpec((1, n_pad, f_pad), lambda g: (g, 0, 0)),
        # Per-step resident footprint (double-buffered): A 16K + X 32K + W 64K +
        # ss 4K + out 32K, all x2  <  0.5 MiB.
        compiler_params=pltpu.CompilerParams(
            dimension_semantics=("parallel",),
            vmem_limit_bytes=16 << 20),
    )(a_p, x_p, w_stack, ss_stack)

    out = out_p[:, :n, :num_classes]
    return out[0] if single else out


def build_normalized_adjacency(edge_index, num_nodes):
    """Dense D^-1/2 (A + I) D^-1/2 from a [2, E] edge_index (symmetrized).

    Duplicate edges accumulate (scatter_add semantics, as in PyG's gcn_norm).
    TODO(synk): PyG's GCNConv does not symmetrize a directed edge_index; this
    demo symmetrizes so the GCN operates on a well-posed undirected graph.
    """
    src, dst = edge_index[0], edge_index[1]
    rows = jnp.concatenate([src, dst])
    cols = jnp.concatenate([dst, src])
    a = jnp.zeros((num_nodes, num_nodes), jnp.float32).at[rows, cols].add(1.0)
    a = a + jnp.eye(num_nodes, dtype=jnp.float32)        # self loops
    deg = a.sum(axis=1)
    dinv = jax.lax.rsqrt(deg)
    return a * dinv[:, None] * dinv[None, :]


def init_params(key, in_dim, hidden_dim, num_classes):
    dims = [(in_dim, hidden_dim), (hidden_dim, hidden_dim),
            (hidden_dim, hidden_dim), (hidden_dim, num_classes)]
    params = []
    for i, (din, dout) in enumerate(dims):
        key, kw, km, kv, kg, kb = jax.random.split(key, 6)
        scale = 1.0 / jnp.sqrt(jnp.float32(din))
        w = jax.random.uniform(kw, (din, dout), jnp.float32, -scale, scale)
        b = jnp.zeros((1, dout), jnp.float32)
        if i < 3:  # layers 1-3 have BatchNorm
            gamma = 1.0 + 0.1 * jax.random.normal(kg, (1, dout), jnp.float32)
            beta = 0.1 * jax.random.normal(kb, (1, dout), jnp.float32)
            mean = 0.1 * jax.random.normal(km, (1, dout), jnp.float32)
            var = jax.random.uniform(kv, (1, dout), jnp.float32, 0.5, 1.5)
            bn = (gamma, beta, mean, var)
        else:
            bn = None
        params.append((w, b, bn))
    return params


def trojan_gnn_reference(x, a_hat, params):
    """Pure-JAX reference in the original (un-fused, un-folded) form."""
    h = x
    for (w, b, bn) in params:
        h = a_hat @ (h @ w) + b
        if bn is not None:
            gamma, beta, mean, var = bn
            h = (h - mean) * jax.lax.rsqrt(var + EPS) * gamma + beta
            h = jnp.maximum(h, 0.0)
    return h


if __name__ == "__main__":
    B, N, E = 2, 64, 96              # graphs, nodes/graph, edges/graph
    IN_DIM, HIDDEN, NUM_CLASSES = 16, 32, 8

    key = jax.random.PRNGKey(0)
    kp, kd = jax.random.split(key)
    params = init_params(kp, IN_DIM, HIDDEN, NUM_CLASSES)

    xs, ahats = [], []
    for _ in range(B):
        kd, kx, ke1, ke2 = jax.random.split(kd, 4)
        xs.append(jax.random.normal(kx, (N, IN_DIM), jnp.float32))
        edge_index = jnp.stack([
            jax.random.randint(ke1, (E,), 0, N),
            jax.random.randint(ke2, (E,), 0, N),
        ])                            # [2, E]
        ahats.append(build_normalized_adjacency(edge_index, N))
    x_b = jnp.stack(xs)               # [B, N, IN_DIM]
    a_b = jnp.stack(ahats)            # [B, N, N]

    out = trojan_gnn_forward(x_b, a_b, params)
    out = jax.block_until_ready(out)
    assert out.shape == (B, N, NUM_CLASSES)

    for gi in range(B):
        ref = trojan_gnn_reference(x_b[gi], a_b[gi], params)
        assert jnp.allclose(out[gi], ref, atol=1e-3, rtol=1e-3), \
            f"mismatch vs pure-JAX reference on graph {gi}"

    print("KERNEL_OK")
</pallas_src>

<mosaic_0001>
module attributes {stable_mosaic.version = 11 : i64} {
  func.func @fused_gnn_kernel(%arg0: i32, %arg1: memref<1x64x64xf32, #tpu.memory_space<vmem>>, %arg2: memref<1x64x128xf32, #tpu.memory_space<vmem>>, %arg3: memref<4x32x128xf32, #tpu.memory_space<vmem>>, %arg4: memref<8x128xf32, #tpu.memory_space<vmem>>, %arg5: memref<1x64x128xf32, #tpu.memory_space<vmem>>) attributes {dimension_semantics = [#tpu.dimension_semantics<parallel>], iteration_bounds = array<i64: 2>, scalar_prefetch = 0 : i64, scratch_operands = 0 : i64, tpu.core_type = #tpu.core_type<tc>, window_params = [{transform_indices = @transform_0, window_bounds = array<i64: 1, 64, 64>}, {transform_indices = @transform_1, window_bounds = array<i64: 1, 64, 128>}, {pipeline_mode = #tpu.pipeline_mode<synchronous>, transform_indices = @transform_2, window_bounds = array<i64: 4, 32, 128>}, {pipeline_mode = #tpu.pipeline_mode<synchronous>, transform_indices = @transform_3, window_bounds = array<i64: 8, 128>}, {transform_indices = @transform_4, window_bounds = array<i64: 1, 64, 128>}]} {
    %c0 = arith.constant 0 : index
    %c0_0 = arith.constant 0 : index
    %c0_1 = arith.constant 0 : index
    %0 = vector.load %arg2[%c0, %c0_0, %c0_1] : memref<1x64x128xf32, #tpu.memory_space<vmem>>, vector<1x64x128xf32>
    %1 = vector.shape_cast %0 : vector<1x64x128xf32> to vector<64x128xf32>
    %2 = vector.extract_strided_slice %1 {offsets = [0, 0], sizes = [64, 32], strides = [1, 1]} : vector<64x128xf32> to vector<64x32xf32>
    %c0_2 = arith.constant 0 : index
    %c0_3 = arith.constant 0 : index
    %c0_4 = arith.constant 0 : index
    %3 = vector.load %arg3[%c0_2, %c0_3, %c0_4] : memref<4x32x128xf32, #tpu.memory_space<vmem>>, vector<1x32x128xf32>
    %4 = vector.shape_cast %3 : vector<1x32x128xf32> to vector<32x128xf32>
    %cst = arith.constant dense<0.000000e+00> : vector<64x128xf32>
    %5 = tpu.matmul %2, %4, %cst {dimension_numbers = #tpu.dot_dimension_numbers<[1], [0], [0], [1], [0, 0, 1, 1], [], []>} : vector<64x32xf32>, vector<32x128xf32>, vector<64x128xf32> -> vector<64x128xf32>
    %c0_5 = arith.constant 0 : index
    %c0_6 = arith.constant 0 : index
    %c0_7 = arith.constant 0 : index
    %6 = vector.load %arg1[%c0_5, %c0_6, %c0_7] : memref<1x64x64xf32, #tpu.memory_space<vmem>>, vector<1x64x64xf32>
    %7 = vector.shape_cast %6 : vector<1x64x64xf32> to vector<64x64xf32>
    %cst_8 = arith.constant dense<0.000000e+00> : vector<64x128xf32>
    %8 = tpu.matmul %7, %5, %cst_8 {dimension_numbers = #tpu.dot_dimension_numbers<[1], [0], [0], [1], [0, 0, 1, 1], [], []>} : vector<64x64xf32>, vector<64x128xf32>, vector<64x128xf32> -> vector<64x128xf32>
    %c0_9 = arith.constant 0 : index
    %c0_10 = arith.constant 0 : index
    %9 = vector.load %arg4[%c0_9, %c0_10] : memref<8x128xf32, #tpu.memory_space<vmem>>, vector<1x128xf32>
    %c1 = arith.constant 1 : index
    %c0_11 = arith.constant 0 : index
    %10 = vector.load %arg4[%c1, %c0_11] : memref<8x128xf32, #tpu.memory_space<vmem>>, vector<1x128xf32>
    %11 = vector.broadcast %9 : vector<1x128xf32> to vector<64x128xf32>
    %12 = arith.mulf %8, %11 : vector<64x128xf32>
    %13 = vector.broadcast %10 : vector<1x128xf32> to vector<64x128xf32>
    %14 = arith.addf %12, %13 : vector<64x128xf32>
    %cst_12 = arith.constant 0.000000e+00 : f32
    %15 = vector.broadcast %cst_12 : f32 to vector<64x128xf32>
    %16 = arith.maximumf %14, %15 : vector<64x128xf32>
    %17 = vector.extract_strided_slice %16 {offsets = [0, 0], sizes = [64, 32], strides = [1, 1]} : vector<64x128xf32> to vector<64x32xf32>
    %c1_13 = arith.constant 1 : index
    %c0_14 = arith.constant 0 : index
    %c0_15 = arith.constant 0 : index
    %18 = vector.load %arg3[%c1_13, %c0_14, %c0_15] : memref<4x32x128xf32, #tpu.memory_space<vmem>>, vector<1x32x128xf32>
    %19 = vector.shape_cast %18 : vector<1x32x128xf32> to vector<32x128xf32>
    %cst_16 = arith.constant dense<0.000000e+00> : vector<64x128xf32>
    %20 = tpu.matmul %17, %19, %cst_16 {dimension_numbers = #tpu.dot_dimension_numbers<[1], [0], [0], [1], [0, 0, 1, 1], [], []>} : vector<64x32xf32>, vector<32x128xf32>, vector<64x128xf32> -> vector<64x128xf32>
    %c0_17 = arith.constant 0 : index
    %c0_18 = arith.constant 0 : index
    %c0_19 = arith.constant 0 : index
    %21 = vector.load %arg1[%c0_17, %c0_18, %c0_19] : memref<1x64x64xf32, #tpu.memory_space<vmem>>, vector<1x64x64xf32>
    %22 = vector.shape_cast %21 : vector<1x64x64xf32> to vector<64x64xf32>
    %cst_20 = arith.constant dense<0.000000e+00> : vector<64x128xf32>
    %23 = tpu.matmul %22, %20, %cst_20 {dimension_numbers = #tpu.dot_dimension_numbers<[1], [0], [0], [1], [0, 0, 1, 1], [], []>} : vector<64x64xf32>, vector<64x128xf32>, vector<64x128xf32> -> vector<64x128xf32>
    %c2 = arith.constant 2 : index
    %c0_21 = arith.constant 0 : index
    %24 = vector.load %arg4[%c2, %c0_21] : memref<8x128xf32, #tpu.memory_space<vmem>>, vector<1x128xf32>
    %c3 = arith.constant 3 : index
    %c0_22 = arith.constant 0 : index
    %25 = vector.load %arg4[%c3, %c0_22] : memref<8x128xf32, #tpu.memory_space<vmem>>, vector<1x128xf32>
    %26 = vector.broadcast %24 : vector<1x128xf32> to vector<64x128xf32>
    %27 = arith.mulf %23, %26 : vector<64x128xf32>
    %28 = vector.broadcast %25 : vector<1x128xf32> to vector<64x128xf32>
    %29 = arith.addf %27, %28 : vector<64x128xf32>
    %cst_23 = arith.constant 0.000000e+00 : f32
    %30 = vector.broadcast %cst_23 : f32 to vector<64x128xf32>
    %31 = arith.maximumf %29, %30 : vector<64x128xf32>
    %32 = vector.extract_strided_slice %31 {offsets = [0, 0], sizes = [64, 32], strides = [1, 1]} : vector<64x128xf32> to vector<64x32xf32>
    %c2_24 = arith.constant 2 : index
    %c0_25 = arith.constant 0 : index
    %c0_26 = arith.constant 0 : index
    %33 = vector.load %arg3[%c2_24, %c0_25, %c0_26] : memref<4x32x128xf32, #tpu.memory_space<vmem>>, vector<1x32x128xf32>
    %34 = vector.shape_cast %33 : vector<1x32x128xf32> to vector<32x128xf32>
    %cst_27 = arith.constant dense<0.000000e+00> : vector<64x128xf32>
    %35 = tpu.matmul %32, %34, %cst_27 {dimension_numbers = #tpu.dot_dimension_numbers<[1], [0], [0], [1], [0, 0, 1, 1], [], []>} : vector<64x32xf32>, vector<32x128xf32>, vector<64x128xf32> -> vector<64x128xf32>
    %c0_28 = arith.constant 0 : index
    %c0_29 = arith.constant 0 : index
    %c0_30 = arith.constant 0 : index
    %36 = vector.load %arg1[%c0_28, %c0_29, %c0_30] : memref<1x64x64xf32, #tpu.memory_space<vmem>>, vector<1x64x64xf32>
    %37 = vector.shape_cast %36 : vector<1x64x64xf32> to vector<64x64xf32>
    %cst_31 = arith.constant dense<0.000000e+00> : vector<64x128xf32>
    %38 = tpu.matmul %37, %35, %cst_31 {dimension_numbers = #tpu.dot_dimension_numbers<[1], [0], [0], [1], [0, 0, 1, 1], [], []>} : vector<64x64xf32>, vector<64x128xf32>, vector<64x128xf32> -> vector<64x128xf32>
    %c4 = arith.constant 4 : index
    %c0_32 = arith.constant 0 : index
    %39 = vector.load %arg4[%c4, %c0_32] : memref<8x128xf32, #tpu.memory_space<vmem>>, vector<1x128xf32>
    %c5 = arith.constant 5 : index
    %c0_33 = arith.constant 0 : index
    %40 = vector.load %arg4[%c5, %c0_33] : memref<8x128xf32, #tpu.memory_space<vmem>>, vector<1x128xf32>
    %41 = vector.broadcast %39 : vector<1x128xf32> to vector<64x128xf32>
    %42 = arith.mulf %38, %41 : vector<64x128xf32>
    %43 = vector.broadcast %40 : vector<1x128xf32> to vector<64x128xf32>
    %44 = arith.addf %42, %43 : vector<64x128xf32>
    %cst_34 = arith.constant 0.000000e+00 : f32
    %45 = vector.broadcast %cst_34 : f32 to vector<64x128xf32>
    %46 = arith.maximumf %44, %45 : vector<64x128xf32>
    %47 = vector.extract_strided_slice %46 {offsets = [0, 0], sizes = [64, 32], strides = [1, 1]} : vector<64x128xf32> to vector<64x32xf32>
    %c3_35 = arith.constant 3 : index
    %c0_36 = arith.constant 0 : index
    %c0_37 = arith.constant 0 : index
    %48 = vector.load %arg3[%c3_35, %c0_36, %c0_37] : memref<4x32x128xf32, #tpu.memory_space<vmem>>, vector<1x32x128xf32>
    %49 = vector.shape_cast %48 : vector<1x32x128xf32> to vector<32x128xf32>
    %cst_38 = arith.constant dense<0.000000e+00> : vector<64x128xf32>
    %50 = tpu.matmul %47, %49, %cst_38 {dimension_numbers = #tpu.dot_dimension_numbers<[1], [0], [0], [1], [0, 0, 1, 1], [], []>} : vector<64x32xf32>, vector<32x128xf32>, vector<64x128xf32> -> vector<64x128xf32>
    %c0_39 = arith.constant 0 : index
    %c0_40 = arith.constant 0 : index
    %c0_41 = arith.constant 0 : index
    %51 = vector.load %arg1[%c0_39, %c0_40, %c0_41] : memref<1x64x64xf32, #tpu.memory_space<vmem>>, vector<1x64x64xf32>
    %52 = vector.shape_cast %51 : vector<1x64x64xf32> to vector<64x64xf32>
    %cst_42 = arith.constant dense<0.000000e+00> : vector<64x128xf32>
    %53 = tpu.matmul %52, %50, %cst_42 {dimension_numbers = #tpu.dot_dimension_numbers<[1], [0], [0], [1], [0, 0, 1, 1], [], []>} : vector<64x64xf32>, vector<64x128xf32>, vector<64x128xf32> -> vector<64x128xf32>
    %c6 = arith.constant 6 : index
    %c0_43 = arith.constant 0 : index
    %54 = vector.load %arg4[%c6, %c0_43] : memref<8x128xf32, #tpu.memory_space<vmem>>, vector<1x128xf32>
    %c7 = arith.constant 7 : index
    %c0_44 = arith.constant 0 : index
    %55 = vector.load %arg4[%c7, %c0_44] : memref<8x128xf32, #tpu.memory_space<vmem>>, vector<1x128xf32>
    %56 = vector.broadcast %54 : vector<1x128xf32> to vector<64x128xf32>
    %57 = arith.mulf %53, %56 : vector<64x128xf32>
    %58 = vector.broadcast %55 : vector<1x128xf32> to vector<64x128xf32>
    %59 = arith.addf %57, %58 : vector<64x128xf32>
    %c0_45 = arith.constant 0 : index
    %c0_46 = arith.constant 0 : index
    %c0_47 = arith.constant 0 : index
    %60 = vector.load %arg5[%c0_45, %c0_46, %c0_47] : memref<1x64x128xf32, #tpu.memory_space<vmem>>, vector<1x64x128xf32>
    %61 = vector.shape_cast %60 : vector<1x64x128xf32> to vector<64x128xf32>
    %62 = vector.shape_cast %59 : vector<64x128xf32> to vector<1x64x128xf32>
    tpu.vector_store %arg5[%c0_45, %c0_46, %c0_47], %62 {strides = array<i32>} : memref<1x64x128xf32, #tpu.memory_space<vmem>>, vector<1x64x128xf32>,
    return
  }
  func.func @transform_0(%arg0: i32) -> (i32, i32, i32) {
    %c0_i32 = arith.constant 0 : i32
    %c0_i32_0 = arith.constant 0 : i32
    %c0_i32_1 = arith.constant 0 : i32
    return %arg0, %c0_i32, %c0_i32_0 : i32, i32, i32
  }
  func.func @transform_1(%arg0: i32) -> (i32, i32, i32) {
    %c0_i32 = arith.constant 0 : i32
    %c0_i32_0 = arith.constant 0 : i32
    %c0_i32_1 = arith.constant 0 : i32
    return %arg0, %c0_i32, %c0_i32_0 : i32, i32, i32
  }
  func.func @transform_2(%arg0: i32) -> (i32, i32, i32) {
    %c0_i32 = arith.constant 0 : i32
    %c0_i32_0 = arith.constant 0 : i32
    %c0_i32_1 = arith.constant 0 : i32
    %c0_i32_2 = arith.constant 0 : i32
    return %c0_i32, %c0_i32_0, %c0_i32_1 : i32, i32, i32
  }
  func.func @transform_3(%arg0: i32) -> (i32, i32) {
    %c0_i32 = arith.constant 0 : i32
    %c0_i32_0 = arith.constant 0 : i32
    %c0_i32_1 = arith.constant 0 : i32
    return %c0_i32, %c0_i32_0 : i32, i32
  }
  func.func @transform_4(%arg0: i32) -> (i32, i32, i32) {
    %c0_i32 = arith.constant 0 : i32
    %c0_i32_0 = arith.constant 0 : i32
    %c0_i32_1 = arith.constant 0 : i32
    return %arg0, %c0_i32, %c0_i32_0 : i32, i32, i32
  }
}

</mosaic_0001>

<llo_original>
// kernel: trojan_gnn_forward.1
$region0: #{trojan_gnn_forward.1}
  #allocation0 [shape = 'u32[]', space=smem, size = 0x4, offset = 0x4, fixed_abs, tag = 'smem constant byte address 0x4 - core index']
  #allocation1 [shape = 'u32[72,128]{1,0:T(1,128)}', space=vmem, size = 0x9000, scoped, tag = 'internal scratch']
  %s0 = inlined_call_operand.vmem [shape: f32[2,64,64], index: 0, kind: input, shape index: {}]
  %s1 = inlined_call_operand.vmem [shape: f32[2,64,128], index: 1, kind: input, shape index: {}]
  %s2 = inlined_call_operand.vmem [shape: f32[4,32,128], index: 2, kind: input, shape index: {}]
  %s3 = inlined_call_operand.vmem [shape: f32[8,128], index: 3, kind: input, shape index: {}]
  %s4 = inlined_call_operand.vmem [shape: f32[2,64,128], index: 4, kind: output, shape index: {}]
  %s5 = sld [smem:[#allocation0]]
  $region49: #{trojan_gnn_forward.1} parent=0
    _
  %s7 = ssub.s32 1, %s5
  %s8 = scalar_select 0, %s7, %s5
  loop: start=0, step=1, limit=4
  $region2: #{trojan_gnn_forward.1} parent=0 // loop_pre_header
    _
  $region3: #{trojan_gnn_forward.1} parent=0 // loop_header
    %s10 = sphi 0, %s14
    %p11 = scmp.ge.s32.totalorder %s10, 4
    %s20 = sphi 0, %s22
    %s23 = sphi 0, %s20
    %s24 = sphi 0, %s23
    %s40 = sphi 0, %s24
    %s46 = sphi 0, %s48
    %s49 = sphi 0, %s46
    %s50 = sphi 0, %s49
    %s66 = sphi 0, %s50
    %s70 = sphi 0, %s70
    %s72 = sphi 0, %s70
    %s73 = sphi 0, %s72
    %s87 = sphi 0, %s73
    %s91 = sphi 0, %s91
    %s93 = sphi 0, %s91
    %s94 = sphi 0, %s93
    %s108 = sphi 0, %s94
    %s114 = sphi 0, %s116
    %s117 = sphi 0, %s114
    %s118 = sphi 0, %s117
    %s134 = sphi 0, %s118
  $region4: #{trojan_gnn_forward.1} parent=0 // loop_header_branch
    %13 = sbr.rel (%p11) target = $region8
  $region5: #{trojan_gnn_forward.1} parent=0 // loop_body
    %s15 = ssub.s32 %s10, 1
    %s16 = ssub.s32 %s10, 2
    %s17 = sadd.s32 %s10, 1
    %s18 = ssub.s32 %s10, %s17
    %p19 = scmp.eq.s32.totalorder %s18, 0
    %s21 = sadd.s32 %s20, 1
    %s22 = scalar_select %p19, %s20, %s21
    %p25 = pneg %p19
    %p26 = scmp.eq.s32.totalorder %s10, 1
    %p27 = por %p25, %p26
    %p28 = scmp.ne.s32.totalorder %s20, %s23
    %p29 = scmp.eq.s32.totalorder %s10, 0
    %p30 = por %p28, %p29
    %p31 = scmp.ne.s32.totalorder %s20, %s23
    %p32 = scmp.eq.s32.totalorder %s15, 1
    %p33 = por %p31, %p32
    %p34 = scmp.ne.s32.totalorder %s23, %s24
    %p35 = scmp.eq.s32.totalorder %s15, 0
    %p36 = por %p34, %p35
    %p37 = scmp.ne.s32.totalorder %s23, %s24
    %p38 = scmp.eq.s32.totalorder %s16, 1
    %p39 = por %p37, %p38
    %p41 = scmp.ne.s32.totalorder %s24, %s40
    %p42 = scmp.eq.s32.totalorder %s16, 0
    %p43 = por %p41, %p42
    %s44 = ssub.s32 %s10, %s17
    %p45 = scmp.eq.s32.totalorder %s44, 0
    %s47 = sadd.s32 %s46, 1
    %s48 = scalar_select %p45, %s46, %s47
    %p51 = pneg %p45
    %p52 = scmp.eq.s32.totalorder %s10, 1
    %p53 = por %p51, %p52
    %p54 = scmp.ne.s32.totalorder %s46, %s49
    %p55 = scmp.eq.s32.totalorder %s10, 0
    %p56 = por %p54, %p55
    %p57 = scmp.ne.s32.totalorder %s46, %s49
    %p58 = scmp.eq.s32.totalorder %s15, 1
    %p59 = por %p57, %p58
    %p60 = scmp.ne.s32.totalorder %s49, %s50
    %p61 = scmp.eq.s32.totalorder %s15, 0
    %p62 = por %p60, %p61
    %p63 = scmp.ne.s32.totalorder %s49, %s50
    %p64 = scmp.eq.s32.totalorder %s16, 1
    %p65 = por %p63, %p64
    %p67 = scmp.ne.s32.totalorder %s50, %s66
    %p68 = scmp.eq.s32.totalorder %s16, 0
    %p69 = por %p67, %p68
    %s71 = sadd.s32 %s70, 1
    %p74 = scmp.eq.s32.totalorder %s10, 1
    %p75 = scmp.ne.s32.totalorder %s70, %s72
    %p76 = scmp.eq.s32.totalorder %s10, 0
    %p77 = por %p75, %p76
    %p78 = scmp.ne.s32.totalorder %s70, %s72
    %p79 = scmp.eq.s32.totalorder %s15, 1
    %p80 = por %p78, %p79
    %p81 = scmp.ne.s32.totalorder %s72, %s73
    %p82 = scmp.eq.s32.totalorder %s15, 0
    %p83 = por %p81, %p82
    %p84 = scmp.ne.s32.totalorder %s72, %s73
    %p85 = scmp.eq.s32.totalorder %s16, 1
    %p86 = por %p84, %p85
    %p88 = scmp.ne.s32.totalorder %s73, %s87
    %p89 = scmp.eq.s32.totalorder %s16, 0
    %p90 = por %p88, %p89
    %s92 = sadd.s32 %s91, 1
    %p95 = scmp.eq.s32.totalorder %s10, 1
    %p96 = scmp.ne.s32.totalorder %s91, %s93
    %p97 = scmp.eq.s32.totalorder %s10, 0
    %p98 = por %p96, %p97
    %p99 = scmp.ne.s32.totalorder %s91, %s93
    %p100 = scmp.eq.s32.totalorder %s15, 1
    %p101 = por %p99, %p100
    %p102 = scmp.ne.s32.totalorder %s93, %s94
    %p103 = scmp.eq.s32.totalorder %s15, 0
    %p104 = por %p102, %p103
    %p105 = scmp.ne.s32.totalorder %s93, %s94
    %p106 = scmp.eq.s32.totalorder %s16, 1
    %p107 = por %p105, %p106
    %p109 = scmp.ne.s32.totalorder %s94, %s108
    %p110 = scmp.eq.s32.totalorder %s16, 0
    %p111 = por %p109, %p110
    %s112 = ssub.s32 %s10, %s17
    %p113 = scmp.eq.s32.totalorder %s112, 0
    %s115 = sadd.s32 %s114, 1
    %s116 = scalar_select %p113, %s114, %s115
    %p119 = pneg %p113
    %p120 = scmp.eq.s32.totalorder %s10, 1
    %p121 = por %p119, %p120
    %p122 = scmp.ne.s32.totalorder %s114, %s117
    %p123 = scmp.eq.s32.totalorder %s10, 0
    %p124 = por %p122, %p123
    %p125 = scmp.ne.s32.totalorder %s114, %s117
    %p126 = scmp.eq.s32.totalorder %s15, 1
    %p127 = por %p125, %p126
    %p128 = scmp.ne.s32.totalorder %s117, %s118
    %p129 = scmp.eq.s32.totalorder %s15, 0
    %p130 = por %p128, %p129
    %p131 = scmp.ne.s32.totalorder %s117, %s118
    %p132 = scmp.eq.s32.totalorder %s16, 1
    %p133 = por %p131, %p132
    %p135 = scmp.ne.s32.totalorder %s118, %s134
    %p136 = scmp.eq.s32.totalorder %s16, 0
    %p137 = por %p135, %p136
    %p138 = scmp.le.s32.totalorder 1, %s10
    %p139 = scmp.lt.s32.totalorder %s10, 3
    %p140 = pnand %p138, %p139
    %p141 = pneg %p140
    // Predicated region
    $region9: #{trojan_gnn_forward.1} parent=5 // pred_check
      _
    $region10: #{trojan_gnn_forward.1} parent=5 // pred_check_branch
      %143 = sbr.rel (%p140) target = $region12
    $region11: #{trojan_gnn_forward.1} parent=5 // pred_region
      %s144 = ssub.s32 %s10, 1
      // Predicated region
      $region13: #{trojan_gnn_forward.1} parent=11 // pred_check
        %p145 = pneg %p83
      $region14: #{trojan_gnn_forward.1} parent=11 // pred_check_branch
        %147 = sbr.rel (%p145) target = $region16
      $region15: #{trojan_gnn_forward.1} parent=11 // pred_region
        _
      $region16: #{trojan_gnn_forward.1} parent=11 // pred_fallthru
        _
      // Predicated region
      $region17: #{trojan_gnn_forward.1} parent=11 // pred_check
        %p148 = pneg %p104
      $region18: #{trojan_gnn_forward.1} parent=11 // pred_check_branch
        %150 = sbr.rel (%p148) target = $region20
      $region19: #{trojan_gnn_forward.1} parent=11 // pred_region
        _
      $region20: #{trojan_gnn_forward.1} parent=11 // pred_fallthru
        _
    $region12: #{trojan_gnn_forward.1} parent=5 // pred_fallthru
      _
    %p151 = scmp.lt.s32.totalorder %s10, 2
    // Predicated region
    $region21: #{trojan_gnn_forward.1} parent=5 // pred_check
      %p152 = pneg %p151
    $region22: #{trojan_gnn_forward.1} parent=5 // pred_check_branch
      %154 = sbr.rel (%p152) target = $region24
    $region23: #{trojan_gnn_forward.1} parent=5 // pred_region
      // Predicated region
      $region25: #{trojan_gnn_forward.1} parent=23 // pred_check
        %p155 = pneg %p30
      $region26: #{trojan_gnn_forward.1} parent=23 // pred_check_branch
        %157 = sbr.rel (%p155) target = $region28
      $region27: #{trojan_gnn_forward.1} parent=23 // pred_region
        %p158 = scmp.lt.s32.totalorder %s10, 1
        %s159 = scalar_select %p158, %s10, 1
        %s160 = smul.addr %s159, 8
        %s161 = smul.addr %s160, 8
        %s162 = scalar_lea.vmem %s0, %s161
      $region28: #{trojan_gnn_forward.1} parent=23 // pred_fallthru
        _
      // Predicated region
      $region29: #{trojan_gnn_forward.1} parent=23 // pred_check
        %p163 = pneg %p56
      $region30: #{trojan_gnn_forward.1} parent=23 // pred_check_branch
        %165 = sbr.rel (%p163) target = $region32
      $region31: #{trojan_gnn_forward.1} parent=23 // pred_region
        %p166 = scmp.lt.s32.totalorder %s10, 1
        %s167 = scalar_select %p166, %s10, 1
        %s168 = smul.addr %s167, 8
        %s169 = smul.addr %s168, 8
        %s170 = scalar_lea.vmem %s1, %s169
      $region32: #{trojan_gnn_forward.1} parent=23 // pred_fallthru
        _
    $region24: #{trojan_gnn_forward.1} parent=5 // pred_fallthru
      _
    %p171 = scmp.le.s32.totalorder 1, %s10
    %p172 = scmp.lt.s32.totalorder %s10, 3
    %p173 = pnand %p171, %p172
    %p174 = pneg %p173
    // Predicated region
    $region33: #{trojan_gnn_forward.1} parent=5 // pred_check
      _
    $region34: #{trojan_gnn_forward.1} parent=5 // pred_check_branch
      %176 = sbr.rel (%p173) target = $region36
    $region35: #{trojan_gnn_forward.1} parent=5 // pred_region
      %s177 = ssub.s32 %s10, 1
      %p178 = scmp.lt.s32.totalorder %s15, 1
      %s179 = scalar_select %p178, %s15, 1
      %s180 = smul.addr %s179, 8
      %s181 = smul.addr %s180, 8
      %s182 = scalar_lea.vmem %s0, %s181
      %p183 = pneg %p36
      %p184 = pneg %p33
      %p185 = scmp.lt.s32.totalorder %s15, 1
      %s186 = scalar_select %p185, %s15, 1
      %s187 = smul.addr %s186, 8
      %s188 = smul.addr %s187, 8
      %s189 = scalar_lea.vmem %s1, %s188
      %p190 = pneg %p62
      %p191 = pneg %p59
      %p192 = pneg %p83
      %p193 = pneg %p80
      %p194 = pneg %p104
      %p195 = pneg %p101
      %p196 = pneg %p130
      %p197 = pneg %p127
      %p198 = scmp.lt.s32.totalorder %s15, 1
      %s199 = scalar_select %p198, %s15, 1
      %s200 = smul.addr %s199, 8
      %s201 = smul.addr %s200, 8
      %s202 = scalar_lea.vmem %s4, %s201
      %p203 = scmp.lt.s32.totalorder %s15, 1
      %s204 = scalar_select %p203, %s15, 1
      %s205 = smul.addr %s204, 8
      %s206 = smul.addr %s205, 8
      %s207 = scalar_lea.vmem %s0, %s206
      %p208 = scmp.lt.s32.totalorder %s15, 1
      %s209 = scalar_select %p208, %s15, 1
      %s210 = smul.addr %s209, 8
      %s211 = smul.addr %s210, 8
      %s212 = scalar_lea.vmem %s1, %s211
      %p213 = scmp.lt.s32.totalorder %s15, 1
      %s214 = scalar_select %p213, %s15, 1
      %s215 = smul.addr %s214, 8
      %s216 = smul.addr %s215, 8
      %s217 = scalar_lea.vmem %s4, %s216
      %v218 = vld [vmem:[%s212] sm:$0xff]
      %v219 = vld [vmem:[%s212 + $0x8] sm:$0xff]
      %v220 = vld [vmem:[%s212 + $0x10] sm:$0xff]
      %v221 = vld [vmem:[%s212 + $0x18] sm:$0xff]
      %v222 = vld [vmem:[%s212 + $0x20] sm:$0xff]
      %v223 = vld [vmem:[%s212 + $0x28] sm:$0xff]
      %v224 = vld [vmem:[%s212 + $0x30] sm:$0xff]
      %v225 = vld [vmem:[%s212 + $0x38] sm:$0xff]
      %v226 = vld [vmem:[%s2] sm:$0xff]
      %v227 = vld [vmem:[%s2 + $0x8] sm:$0xff]
      %v228 = vld [vmem:[%s2 + $0x10] sm:$0xff]
      %v229 = vld [vmem:[%s2 + $0x18] sm:$0xff]
      %vm230 = vcmask 261120
      %v232 = vsel %vm230, %v218, 0
      %v235 = vsel %vm230, %v219, 0
      %v238 = vsel %vm230, %v220, 0
      %v241 = vsel %vm230, %v221, 0
      %v244 = vsel %vm230, %v222, 0
      %v247 = vsel %vm230, %v223, 0
      %v250 = vsel %vm230, %v224, 0
      %v253 = vsel %vm230, %v225, 0
      %255 = vmatpush.msra.mxu0 0.0
      %256 = vmatpush.msra.mxu0 0.0
      %257 = vmatpush.msra.mxu0 0.0
      %258 = vmatpush.msra.mxu0 0.0
      %259 = vmatpush.msra.mxu0 0.0
      %260 = vmatpush.msra.mxu0 0.0
      %261 = vmatpush.msra.mxu0 0.0
      %262 = vmatpush.msra.mxu0 0.0
      %263 = vmatpush.msra.mxu0 0.0
      %264 = vmatpush.msra.mxu0 0.0
      %265 = vmatpush.msra.mxu0 0.0
      %266 = vmatpush.msra.mxu0 0.0
      %267 = vmatpush.msra.mxu0 %v229
      %268 = vmatpush.msra.mxu0 %v228
      %269 = vmatpush.msra.mxu0 %v227
      %270 = vmatpush.msra.mxu0 %v226
      %271 = vmatmul.f32.gmra.mxu0 %v232
      %v272 = vpop.f32.mrf.mxu0
      %v273 = vadd.f32 0.0, %v272
      %274 = vmatmul.f32.gmra.mxu0 %v235
      %v275 = vpop.f32.mrf.mxu0
      %v276 = vadd.f32 0.0, %v275
      %277 = vmatmul.f32.gmra.mxu0 %v238
      %v278 = vpop.f32.mrf.mxu0
      %v279 = vadd.f32 0.0, %v278
      %280 = vmatmul.f32.gmra.mxu0 %v241
      %v281 = vpop.f32.mrf.mxu0
      %v282 = vadd.f32 0.0, %v281
      %283 = vmatmul.f32.gmra.mxu0 %v244
      %v284 = vpop.f32.mrf.mxu0
      %v285 = vadd.f32 0.0, %v284
      %286 = vmatmul.f32.gmra.mxu0 %v247
      %v287 = vpop.f32.mrf.mxu0
      %v288 = vadd.f32 0.0, %v287
      %289 = vmatmul.f32.gmra.mxu0 %v250
      %v290 = vpop.f32.mrf.mxu0
      %v291 = vadd.f32 0.0, %v290
      %292 = vmatmul.f32.gmra.mxu0 %v253
      %v293 = vpop.f32.mrf.mxu0
      %v294 = vadd.f32 0.0, %v293
      %295 = vdwg.mxu0
      %v296 = vld [vmem:[%s207] sm:$0xff]
      %v297 = vld [vmem:[%s207 + $0x8] sm:$0xff]
      %v298 = vld [vmem:[%s207 + $0x10] sm:$0xff]
      %v299 = vld [vmem:[%s207 + $0x18] sm:$0xff]
      %v300 = vld [vmem:[%s207 + $0x20] sm:$0xff]
      %v301 = vld [vmem:[%s207 + $0x28] sm:$0xff]
      %v302 = vld [vmem:[%s207 + $0x30] sm:$0xff]
      %v303 = vld [vmem:[%s207 + $0x38] sm:$0xff]
      %vm304 = vcmask 523264
      %v306 = vsel %vm304, %v296, 0
      %v309 = vsel %vm304, %v297, 0
      %v312 = vsel %vm304, %v298, 0
      %v315 = vsel %vm304, %v299, 0
      %v318 = vsel %vm304, %v300, 0
      %v321 = vsel %vm304, %v301, 0
      %v324 = vsel %vm304, %v302, 0
      %v327 = vsel %vm304, %v303, 0
      %329 = vmatpush.msra.mxu0 0.0
      %330 = vmatpush.msra.mxu0 0.0
      %331 = vmatpush.msra.mxu0 0.0
      %332 = vmatpush.msra.mxu0 0.0
      %333 = vmatpush.msra.mxu0 0.0
      %334 = vmatpush.msra.mxu0 0.0
      %335 = vmatpush.msra.mxu0 0.0
      %336 = vmatpush.msra.mxu0 0.0
      %337 = vmatpush.msra.mxu0 %v294
      %338 = vmatpush.msra.mxu0 %v291
      %339 = vmatpush.msra.mxu0 %v288
      %340 = vmatpush.msra.mxu0 %v285
      %341 = vmatpush.msra.mxu0 %v282
      %342 = vmatpush.msra.mxu0 %v279
      %343 = vmatpush.msra.mxu0 %v276
      %344 = vmatpush.msra.mxu0 %v273
      %345 = vmatmul.f32.gmra.mxu0 %v306
      %v346 = vpop.f32.mrf.mxu0
      %v347 = vadd.f32 0.0, %v346
      %348 = vmatmul.f32.gmra.mxu0 %v309
      %v349 = vpop.f32.mrf.mxu0
      %v350 = vadd.f32 0.0, %v349
      %351 = vmatmul.f32.gmra.mxu0 %v312
      %v352 = vpop.f32.mrf.mxu0
      %v353 = vadd.f32 0.0, %v352
      %354 = vmatmul.f32.gmra.mxu0 %v315
      %v355 = vpop.f32.mrf.mxu0
      %v356 = vadd.f32 0.0, %v355
      %357 = vmatmul.f32.gmra.mxu0 %v318
      %v358 = vpop.f32.mrf.mxu0
      %v359 = vadd.f32 0.0, %v358
      %360 = vmatmul.f32.gmra.mxu0 %v321
      %v361 = vpop.f32.mrf.mxu0
      %v362 = vadd.f32 0.0, %v361
      %363 = vmatmul.f32.gmra.mxu0 %v324
      %v364 = vpop.f32.mrf.mxu0
      %v365 = vadd.f32 0.0, %v364
      %366 = vmatmul.f32.gmra.mxu0 %v327
      %v367 = vpop.f32.mrf.mxu0
      %v368 = vadd.f32 0.0, %v367
      %369 = vdwg.mxu0
      %v370 = vld [vmem:[%s3] sm:$0x1]
      %v371 = vld [vmem:[%s3 + $0x1] sm:$0x1]
      %v372 = vperm.slane %v370, 0
      %v373 = vmul.f32 %v347, %v372
      %v374 = vmul.f32 %v350, %v372
      %v375 = vmul.f32 %v353, %v372
      %v376 = vmul.f32 %v356, %v372
      %v377 = vmul.f32 %v359, %v372
      %v378 = vmul.f32 %v362, %v372
      %v379 = vmul.f32 %v365, %v372
      %v380 = vmul.f32 %v368, %v372
      %v381 = vperm.slane %v371, 0
      %v382 = vadd.f32 %v373, %v381
      %v383 = vadd.f32 %v374, %v381
      %v384 = vadd.f32 %v375, %v381
      %v385 = vadd.f32 %v376, %v381
      %v386 = vadd.f32 %v377, %v381
      %v387 = vadd.f32 %v378, %v381
      %v388 = vadd.f32 %v379, %v381
      %v389 = vadd.f32 %v380, %v381
      %v390 = vmax.f32 %v382, 0.0
      %v391 = vmax.f32 %v383, 0.0
      %v392 = vmax.f32 %v384, 0.0
      %v393 = vmax.f32 %v385, 0.0
      %v394 = vmax.f32 %v386, 0.0
      %v395 = vmax.f32 %v387, 0.0
      %v396 = vmax.f32 %v388, 0.0
      %v397 = vmax.f32 %v389, 0.0
      %s398 = scalar_lea.vmem %s2, 32
      %v399 = vld [vmem:[%s398] sm:$0xff]
      %v400 = vld [vmem:[%s398 + $0x8] sm:$0xff]
      %v401 = vld [vmem:[%s398 + $0x10] sm:$0xff]
      %v402 = vld [vmem:[%s398 + $0x18] sm:$0xff]
      %v404 = vsel %vm230, %v390, 0
      %v407 = vsel %vm230, %v391, 0
      %v410 = vsel %vm230, %v392, 0
      %v413 = vsel %vm230, %v393, 0
      %v416 = vsel %vm230, %v394, 0
      %v419 = vsel %vm230, %v395, 0
      %v422 = vsel %vm230, %v396, 0
      %v425 = vsel %vm230, %v397, 0
      %427 = vmatpush.msra.mxu0 0.0
      %428 = vmatpush.msra.mxu0 0.0
      %429 = vmatpush.msra.mxu0 0.0
      %430 = vmatpush.msra.mxu0 0.0
      %431 = vmatpush.msra.mxu0 0.0
      %432 = vmatpush.msra.mxu0 0.0
      %433 = vmatpush.msra.mxu0 0.0
      %434 = vmatpush.msra.mxu0 0.0
      %435 = vmatpush.msra.mxu0 0.0
      %436 = vmatpush.msra.mxu0 0.0
      %437 = vmatpush.msra.mxu0 0.0
      %438 = vmatpush.msra.mxu0 0.0
      %439 = vmatpush.msra.mxu0 %v402
      %440 = vmatpush.msra.mxu0 %v401
      %441 = vmatpush.msra.mxu0 %v400
      %442 = vmatpush.msra.mxu0 %v399
      %443 = vmatmul.f32.gmra.mxu0 %v404
      %v444 = vpop.f32.mrf.mxu0
      %v445 = vadd.f32 0.0, %v444
      %446 = vmatmul.f32.gmra.mxu0 %v407
      %v447 = vpop.f32.mrf.mxu0
      %v448 = vadd.f32 0.0, %v447
      %449 = vmatmul.f32.gmra.mxu0 %v410
      %v450 = vpop.f32.mrf.mxu0
      %v451 = vadd.f32 0.0, %v450
      %452 = vmatmul.f32.gmra.mxu0 %v413
      %v453 = vpop.f32.mrf.mxu0
      %v454 = vadd.f32 0.0, %v453
      %455 = vmatmul.f32.gmra.mxu0 %v416
      %v456 = vpop.f32.mrf.mxu0
      %v457 = vadd.f32 0.0, %v456
      %458 = vmatmul.f32.gmra.mxu0 %v419
      %v459 = vpop.f32.mrf.mxu0
      %v460 = vadd.f32 0.0, %v459
      %461 = vmatmul.f32.gmra.mxu0 %v422
      %v462 = vpop.f32.mrf.mxu0
      %v463 = vadd.f32 0.0, %v462
      %464 = vmatmul.f32.gmra.mxu0 %v425
      %v465 = vpop.f32.mrf.mxu0
      %v466 = vadd.f32 0.0, %v465
      %467 = vdwg.mxu0
      %468 = vmatpush.msra.mxu0 0.0
      %469 = vmatpush.msra.mxu0 0.0
      %470 = vmatpush.msra.mxu0 0.0
      %471 = vmatpush.msra.mxu0 0.0
      %472 = vmatpush.msra.mxu0 0.0
      %473 = vmatpush.msra.mxu0 0.0
      %474 = vmatpush.msra.mxu0 0.0
      %475 = vmatpush.msra.mxu0 0.0
      %476 = vmatpush.msra.mxu0 %v466
      %477 = vmatpush.msra.mxu0 %v463
      %478 = vmatpush.msra.mxu0 %v460
      %479 = vmatpush.msra.mxu0 %v457
      %480 = vmatpush.msra.mxu0 %v454
      %481 = vmatpush.msra.mxu0 %v451
      %482 = vmatpush.msra.mxu0 %v448
      %483 = vmatpush.msra.mxu0 %v445
      %484 = vmatmul.f32.gmra.mxu0 %v306
      %v485 = vpop.f32.mrf.mxu0
      %v486 = vadd.f32 0.0, %v485
      %487 = vmatmul.f32.gmra.mxu0 %v309
      %v488 = vpop.f32.mrf.mxu0
      %v489 = vadd.f32 0.0, %v488
      %490 = vmatmul.f32.gmra.mxu0 %v312
      %v491 = vpop.f32.mrf.mxu0
      %v492 = vadd.f32 0.0, %v491
      %493 = vmatmul.f32.gmra.mxu0 %v315
      %v494 = vpop.f32.mrf.mxu0
      %v495 = vadd.f32 0.0, %v494
      %496 = vmatmul.f32.gmra.mxu0 %v318
      %v497 = vpop.f32.mrf.mxu0
      %v498 = vadd.f32 0.0, %v497
      %499 = vmatmul.f32.gmra.mxu0 %v321
      %v500 = vpop.f32.mrf.mxu0
      %v501 = vadd.f32 0.0, %v500
      %502 = vmatmul.f32.gmra.mxu0 %v324
      %v503 = vpop.f32.mrf.mxu0
      %v504 = vadd.f32 0.0, %v503
      %505 = vmatmul.f32.gmra.mxu0 %v327
      %v506 = vpop.f32.mrf.mxu0
      %v507 = vadd.f32 0.0, %v506
      %508 = vdwg.mxu0
      %v509 = vld [vmem:[%s3 + $0x2] sm:$0x1]
      %v510 = vld [vmem:[%s3 + $0x3] sm:$0x1]
      %v511 = vperm.slane %v509, 0
      %v512 = vmul.f32 %v486, %v511
      %v513 = vmul.f32 %v489, %v511
      %v514 = vmul.f32 %v492, %v511
      %v515 = vmul.f32 %v495, %v511
      %v516 = vmul.f32 %v498, %v511
      %v517 = vmul.f32 %v501, %v511
      %v518 = vmul.f32 %v504, %v511
      %v519 = vmul.f32 %v507, %v511
      %v520 = vperm.slane %v510, 0
      %v521 = vadd.f32 %v512, %v520
      %v522 = vadd.f32 %v513, %v520
      %v523 = vadd.f32 %v514, %v520
      %v524 = vadd.f32 %v515, %v520
      %v525 = vadd.f32 %v516, %v520
      %v526 = vadd.f32 %v517, %v520
      %v527 = vadd.f32 %v518, %v520
      %v528 = vadd.f32 %v519, %v520
      %v529 = vmax.f32 %v521, 0.0
      %v530 = vmax.f32 %v522, 0.0
      %v531 = vmax.f32 %v523, 0.0
      %v532 = vmax.f32 %v524, 0.0
      %v533 = vmax.f32 %v525, 0.0
      %v534 = vmax.f32 %v526, 0.0
      %v535 = vmax.f32 %v527, 0.0
      %v536 = vmax.f32 %v528, 0.0
      %s537 = scalar_lea.vmem %s2, 64
      %v538 = vld [vmem:[%s537] sm:$0xff]
      %v539 = vld [vmem:[%s537 + $0x8] sm:$0xff]
      %v540 = vld [vmem:[%s537 + $0x10] sm:$0xff]
      %v541 = vld [vmem:[%s537 + $0x18] sm:$0xff]
      %v543 = vsel %vm230, %v529, 0
      %v546 = vsel %vm230, %v530, 0
      %v549 = vsel %vm230, %v531, 0
      %v552 = vsel %vm230, %v532, 0
      %v555 = vsel %vm230, %v533, 0
      %v558 = vsel %vm230, %v534, 0
      %v561 = vsel %vm230, %v535, 0
      %v564 = vsel %vm230, %v536, 0
      %566 = vmatpush.msra.mxu0 0.0
      %567 = vmatpush.msra.mxu0 0.0
      %568 = vmatpush.msra.mxu0 0.0
      %569 = vmatpush.msra.mxu0 0.0
      %570 = vmatpush.msra.mxu0 0.0
      %571 = vmatpush.msra.mxu0 0.0
      %572 = vmatpush.msra.mxu0 0.0
      %573 = vmatpush.msra.mxu0 0.0
      %574 = vmatpush.msra.mxu0 0.0
      %575 = vmatpush.msra.mxu0 0.0
      %576 = vmatpush.msra.mxu0 0.0
      %577 = vmatpush.msra.mxu0 0.0
      %578 = vmatpush.msra.mxu0 %v541
      %579 = vmatpush.msra.mxu0 %v540
      %580 = vmatpush.msra.mxu0 %v539
      %581 = vmatpush.msra.mxu0 %v538
      %582 = vmatmul.f32.gmra.mxu0 %v543
      %v583 = vpop.f32.mrf.mxu0
      %v584 = vadd.f32 0.0, %v583
      %585 = vmatmul.f32.gmra.mxu0 %v546
      %v586 = vpop.f32.mrf.mxu0
      %v587 = vadd.f32 0.0, %v586
      %588 = vmatmul.f32.gmra.mxu0 %v549
      %v589 = vpop.f32.mrf.mxu0
      %v590 = vadd.f32 0.0, %v589
      %591 = vmatmul.f32.gmra.mxu0 %v552
      %v592 = vpop.f32.mrf.mxu0
      %v593 = vadd.f32 0.0, %v592
      %594 = vmatmul.f32.gmra.mxu0 %v555
      %v595 = vpop.f32.mrf.mxu0
      %v596 = vadd.f32 0.0, %v595
      %597 = vmatmul.f32.gmra.mxu0 %v558
      %v598 = vpop.f32.mrf.mxu0
      %v599 = vadd.f32 0.0, %v598
      %600 = vmatmul.f32.gmra.mxu0 %v561
      %v601 = vpop.f32.mrf.mxu0
      %v602 = vadd.f32 0.0, %v601
      %603 = vmatmul.f32.gmra.mxu0 %v564
      %v604 = vpop.f32.mrf.mxu0
      %v605 = vadd.f32 0.0, %v604
      %606 = vdwg.mxu0
      %607 = vmatpush.msra.mxu0 0.0
      %608 = vmatpush.msra.mxu0 0.0
      %609 = vmatpush.msra.mxu0 0.0
      %610 = vmatpush.msra.mxu0 0.0
      %611 = vmatpush.msra.mxu0 0.0
      %612 = vmatpush.msra.mxu0 0.0
      %613 = vmatpush.msra.mxu0 0.0
      %614 = vmatpush.msra.mxu0 0.0
      %615 = vmatpush.msra.mxu0 %v605
      %616 = vmatpush.msra.mxu0 %v602
      %617 = vmatpush.msra.mxu0 %v599
      %618 = vmatpush.msra.mxu0 %v596
      %619 = vmatpush.msra.mxu0 %v593
      %620 = vmatpush.msra.mxu0 %v590
      %621 = vmatpush.msra.mxu0 %v587
      %622 = vmatpush.msra.mxu0 %v584
      %623 = vmatmul.f32.gmra.mxu0 %v306
      %v624 = vpop.f32.mrf.mxu0
      %v625 = vadd.f32 0.0, %v624
      %626 = vmatmul.f32.gmra.mxu0 %v309
      %v627 = vpop.f32.mrf.mxu0
      %v628 = vadd.f32 0.0, %v627
      %629 = vmatmul.f32.gmra.mxu0 %v312
      %v630 = vpop.f32.mrf.mxu0
      %v631 = vadd.f32 0.0, %v630
      %632 = vmatmul.f32.gmra.mxu0 %v315
      %v633 = vpop.f32.mrf.mxu0
      %v634 = vadd.f32 0.0, %v633
      %635 = vmatmul.f32.gmra.mxu0 %v318
      %v636 = vpop.f32.mrf.mxu0
      %v637 = vadd.f32 0.0, %v636
      %638 = vmatmul.f32.gmra.mxu0 %v321
      %v639 = vpop.f32.mrf.mxu0
      %v640 = vadd.f32 0.0, %v639
      %641 = vmatmul.f32.gmra.mxu0 %v324
      %v642 = vpop.f32.mrf.mxu0
      %v643 = vadd.f32 0.0, %v642
      %644 = vmatmul.f32.gmra.mxu0 %v327
      %v645 = vpop.f32.mrf.mxu0
      %v646 = vadd.f32 0.0, %v645
      %647 = vdwg.mxu0
      %v648 = vld [vmem:[%s3 + $0x4] sm:$0x1]
      %v649 = vld [vmem:[%s3 + $0x5] sm:$0x1]
      %v650 = vperm.slane %v648, 0
      %v651 = vmul.f32 %v625, %v650
      %v652 = vmul.f32 %v628, %v650
      %v653 = vmul.f32 %v631, %v650
      %v654 = vmul.f32 %v634, %v650
      %v655 = vmul.f32 %v637, %v650
      %v656 = vmul.f32 %v640, %v650
      %v657 = vmul.f32 %v643, %v650
      %v658 = vmul.f32 %v646, %v650
      %v659 = vperm.slane %v649, 0
      %v660 = vadd.f32 %v651, %v659
      %v661 = vadd.f32 %v652, %v659
      %v662 = vadd.f32 %v653, %v659
      %v663 = vadd.f32 %v654, %v659
      %v664 = vadd.f32 %v655, %v659
      %v665 = vadd.f32 %v656, %v659
      %v666 = vadd.f32 %v657, %v659
      %v667 = vadd.f32 %v658, %v659
      %v668 = vmax.f32 %v660, 0.0
      %v669 = vmax.f32 %v661, 0.0
      %v670 = vmax.f32 %v662, 0.0
      %v671 = vmax.f32 %v663, 0.0
      %v672 = vmax.f32 %v664, 0.0
      %v673 = vmax.f32 %v665, 0.0
      %v674 = vmax.f32 %v666, 0.0
      %v675 = vmax.f32 %v667, 0.0
      %s676 = scalar_lea.vmem %s2, 96
      %v677 = vld [vmem:[%s676] sm:$0xff]
      %v678 = vld [vmem:[%s676 + $0x8] sm:$0xff]
      %v679 = vld [vmem:[%s676 + $0x10] sm:$0xff]
      %v680 = vld [vmem:[%s676 + $0x18] sm:$0xff]
      %v682 = vsel %vm230, %v668, 0
      %v685 = vsel %vm230, %v669, 0
      %v688 = vsel %vm230, %v670, 0
      %v691 = vsel %vm230, %v671, 0
      %v694 = vsel %vm230, %v672, 0
      %v697 = vsel %vm230, %v673, 0
      %v700 = vsel %vm230, %v674, 0
      %v703 = vsel %vm230, %v675, 0
      %705 = vmatpush.msra.mxu0 0.0
      %706 = vmatpush.msra.mxu0 0.0
      %707 = vmatpush.msra.mxu0 0.0
      %708 = vmatpush.msra.mxu0 0.0
      %709 = vmatpush.msra.mxu0 0.0
      %710 = vmatpush.msra.mxu0 0.0
      %711 = vmatpush.msra.mxu0 0.0
      %712 = vmatpush.msra.mxu0 0.0
      %713 = vmatpush.msra.mxu0 0.0
      %714 = vmatpush.msra.mxu0 0.0
      %715 = vmatpush.msra.mxu0 0.0
      %716 = vmatpush.msra.mxu0 0.0
      %717 = vmatpush.msra.mxu0 %v680
      %718 = vmatpush.msra.mxu0 %v679
      %719 = vmatpush.msra.mxu0 %v678
      %720 = vmatpush.msra.mxu0 %v677
      %721 = vmatmul.f32.gmra.mxu0 %v682
      %v722 = vpop.f32.mrf.mxu0
      %v723 = vadd.f32 0.0, %v722
      %724 = vmatmul.f32.gmra.mxu0 %v685
      %v725 = vpop.f32.mrf.mxu0
      %v726 = vadd.f32 0.0, %v725
      %727 = vmatmul.f32.gmra.mxu0 %v688
      %v728 = vpop.f32.mrf.mxu0
      %v729 = vadd.f32 0.0, %v728
      %730 = vmatmul.f32.gmra.mxu0 %v691
      %v731 = vpop.f32.mrf.mxu0
      %v732 = vadd.f32 0.0, %v731
      %733 = vmatmul.f32.gmra.mxu0 %v694
      %v734 = vpop.f32.mrf.mxu0
      %v735 = vadd.f32 0.0, %v734
      %736 = vmatmul.f32.gmra.mxu0 %v697
      %v737 = vpop.f32.mrf.mxu0
      %v738 = vadd.f32 0.0, %v737
      %739 = vmatmul.f32.gmra.mxu0 %v700
      %v740 = vpop.f32.mrf.mxu0
      %v741 = vadd.f32 0.0, %v740
      %742 = vmatmul.f32.gmra.mxu0 %v703
      %v743 = vpop.f32.mrf.mxu0
      %v744 = vadd.f32 0.0, %v743
      %745 = vdwg.mxu0
      %746 = vmatpush.msra.mxu0 0.0
      %747 = vmatpush.msra.mxu0 0.0
      %748 = vmatpush.msra.mxu0 0.0
      %749 = vmatpush.msra.mxu0 0.0
      %750 = vmatpush.msra.mxu0 0.0
      %751 = vmatpush.msra.mxu0 0.0
      %752 = vmatpush.msra.mxu0 0.0
      %753 = vmatpush.msra.mxu0 0.0
      %754 = vmatpush.msra.mxu0 %v744
      %755 = vmatpush.msra.mxu0 %v741
      %756 = vmatpush.msra.mxu0 %v738
      %757 = vmatpush.msra.mxu0 %v735
      %758 = vmatpush.msra.mxu0 %v732
      %759 = vmatpush.msra.mxu0 %v729
      %760 = vmatpush.msra.mxu0 %v726
      %761 = vmatpush.msra.mxu0 %v723
      %762 = vmatmul.f32.gmra.mxu0 %v306
      %v763 = vpop.f32.mrf.mxu0
      %v764 = vadd.f32 0.0, %v763
      %765 = vmatmul.f32.gmra.mxu0 %v309
      %v766 = vpop.f32.mrf.mxu0
      %v767 = vadd.f32 0.0, %v766
      %768 = vmatmul.f32.gmra.mxu0 %v312
      %v769 = vpop.f32.mrf.mxu0
      %v770 = vadd.f32 0.0, %v769
      %771 = vmatmul.f32.gmra.mxu0 %v315
      %v772 = vpop.f32.mrf.mxu0
      %v773 = vadd.f32 0.0, %v772
      %774 = vmatmul.f32.gmra.mxu0 %v318
      %v775 = vpop.f32.mrf.mxu0
      %v776 = vadd.f32 0.0, %v775
      %777 = vmatmul.f32.gmra.mxu0 %v321
      %v778 = vpop.f32.mrf.mxu0
      %v779 = vadd.f32 0.0, %v778
      %780 = vmatmul.f32.gmra.mxu0 %v324
      %v781 = vpop.f32.mrf.mxu0
      %v782 = vadd.f32 0.0, %v781
      %783 = vmatmul.f32.gmra.mxu0 %v327
      %v784 = vpop.f32.mrf.mxu0
      %v785 = vadd.f32 0.0, %v784
      %786 = vdwg.mxu0
      %v787 = vld [vmem:[%s3 + $0x6] sm:$0x1]
      %v788 = vld [vmem:[%s3 + $0x7] sm:$0x1]
      %v789 = vperm.slane %v787, 0
      %v790 = vmul.f32 %v764, %v789
      %v791 = vmul.f32 %v767, %v789
      %v792 = vmul.f32 %v770, %v789
      %v793 = vmul.f32 %v773, %v789
      %v794 = vmul.f32 %v776, %v789
      %v795 = vmul.f32 %v779, %v789
      %v796 = vmul.f32 %v782, %v789
      %v797 = vmul.f32 %v785, %v789
      %v798 = vperm.slane %v788, 0
      %v799 = vadd.f32 %v790, %v798
      %v800 = vadd.f32 %v791, %v798
      %v801 = vadd.f32 %v792, %v798
      %v802 = vadd.f32 %v793, %v798
      %v803 = vadd.f32 %v794, %v798
      %v804 = vadd.f32 %v795, %v798
      %v805 = vadd.f32 %v796, %v798
      %v806 = vadd.f32 %v797, %v798
      %807 = vst [vmem:[%s217] sm:$0xff] %v799
      %808 = vst [vmem:[%s217 + $0x8] sm:$0xff] %v800
      %809 = vst [vmem:[%s217 + $0x10] sm:$0xff] %v801
      %810 = vst [vmem:[%s217 + $0x18] sm:$0xff] %v802
      %811 = vst [vmem:[%s217 + $0x20] sm:$0xff] %v803
      %812 = vst [vmem:[%s217 + $0x28] sm:$0xff] %v804
      %813 = vst [vmem:[%s217 + $0x30] sm:$0xff] %v805
      %814 = vst [vmem:[%s217 + $0x38] sm:$0xff] %v806
      %p815 = scmp.lt.s32.totalorder %s15, 1
      %s816 = scalar_select %p815, %s15, 1
      %s817 = smul.addr %s816, 8
      %s818 = smul.addr %s817, 8
      %s819 = scalar_lea.vmem %s4, %s818
      // Predicated region
      $region37: #{trojan_gnn_forward.1} parent=35 // pred_check
        %p820 = pneg %p127
      $region38: #{trojan_gnn_forward.1} parent=35 // pred_check_branch
        %822 = sbr.rel (%p820) target = $region40
      $region39: #{trojan_gnn_forward.1} parent=35 // pred_region
        _
      $region40: #{trojan_gnn_forward.1} parent=35 // pred_fallthru
        _
    $region36: #{trojan_gnn_forward.1} parent=5 // pred_fallthru
      _
    %p823 = scmp.le.s32.totalorder 2, %s10
    // Predicated region
    $region41: #{trojan_gnn_forward.1} parent=5 // pred_check
      %p824 = pneg %p823
    $region42: #{trojan_gnn_forward.1} parent=5 // pred_check_branch
      %826 = sbr.rel (%p824) target = $region44
    $region43: #{trojan_gnn_forward.1} parent=5 // pred_region
      %s827 = ssub.s32 %s10, 2
      // Predicated region
      $region45: #{trojan_gnn_forward.1} parent=43 // pred_check
        %p828 = pneg %p133
      $region46: #{trojan_gnn_forward.1} parent=43 // pred_check_branch
        %830 = sbr.rel (%p828) target = $region48
      $region47: #{trojan_gnn_forward.1} parent=43 // pred_region
        %p831 = scmp.lt.s32.totalorder %s16, 1
        %s832 = scalar_select %p831, %s16, 1
        %s833 = smul.addr %s832, 8
        %s834 = smul.addr %s833, 8
        %s835 = scalar_lea.vmem %s4, %s834
      $region48: #{trojan_gnn_forward.1} parent=43 // pred_fallthru
        _
    $region44: #{trojan_gnn_forward.1} parent=5 // pred_fallthru
      _
  $region6: #{trojan_gnn_forward.1} parent=0 // loop_footer
    %s14 = sadd.s32 1, %s10
  $region7: #{trojan_gnn_forward.1} parent=0 // loop_footer_branch
    %9 = sbr.rel target = $region3
  $region8: #{trojan_gnn_forward.1} parent=0 // loop_exit
    _

</llo_original>
